<compile_context>
chip_gen: v5e
topology: v5e:2x2
jax: 0.10.0
libtpu: 0.0.40
codegen_flags: <defaults>
</compile_context>

<pallas_src>
import functools

import jax
import jax.numpy as jnp
from jax.experimental import pallas as pl
from jax.experimental.pallas import tpu as pltpu


def _lstm_rollout_kernel(x_ref, mask_ref, h0_ref, c0_ref, wx_ref, wh_ref, b_ref,
                         h_seq_ref, h_out_ref, c_out_ref, gx_ref,
                         *, state_dim, seq_len, batch):
    """Fused T-step masked-LSTMCell rollout, fully inside VMEM.

    x_ref    : (T*B, K)   inputs for every step (flattened time-major)
    mask_ref : (T*B, 1)   1.0 == NO_OP (keep old state)
    h0/c0    : (B, H)     initial state
    wx_ref   : (K, 4H)    W_ih^T with g-gate columns pre-scaled by 2
    wh_ref   : (H, 4H)    W_hh^T with g-gate columns pre-scaled by 2
    b_ref    : (1, 4H)    b_ih + b_hh with g-gate columns pre-scaled by 2
    h_seq_ref: (T*B, H)   per-step hx (what forward() returns each call)
    h_out/c_out: (B, H)   final state
    gx_ref   : (T*B, 4H)  VMEM scratch: hoisted input projection
    """
    H, T, B = state_dim, seq_len, batch

    # (1) Hoisted input projection for the whole rollout: one big MXU matmul.
    gx_ref[...] = (jnp.dot(x_ref[...], wx_ref[...],
                           preferred_element_type=jnp.float32) + b_ref[...])

    wh = wh_ref[...]                                            # resident (H, 4H)
    lane = jax.lax.broadcasted_iota(jnp.int32, (B, 4 * H), 1)   # hoisted iota
    g_lane = (lane >= 2 * H) & (lane < 3 * H)

    def step(t, carry):
        h, c = carry
        row = pl.multiple_of(t * B, B)
        # (2) Only the recurrent part stays in the loop.
        gates = (gx_ref[pl.ds(row, B), :]
                 + jnp.dot(h, wh, preferred_element_type=jnp.float32))
        # (3) One full-width (B, 4H) sigmoid; tanh for g lanes via 2*s - 1
        #     (g columns of wx/wh/b were pre-scaled by 2 in the wrapper).
        s = jax.nn.sigmoid(gates)
        act = jnp.where(g_lane, 2.0 * s - 1.0, s)
        i_g = act[:, 0 * H:1 * H]
        f_g = act[:, 1 * H:2 * H]
        g_g = act[:, 2 * H:3 * H]
        o_g = act[:, 3 * H:4 * H]
        c_new = f_g * c + i_g * g_g
        h_new = o_g * jnp.tanh(c_new)
        # NO_OP masking: keep old state where mask is set.
        keep = mask_ref[pl.ds(row, B), :] > 0.5
        h = jnp.where(keep, h, h_new)
        c = jnp.where(keep, c, c_new)
        h_seq_ref[pl.ds(row, B), :] = h
        return h, c

    h, c = jax.lax.fori_loop(0, T, step, (h0_ref[...], c0_ref[...]), unroll=True)
    h_out_ref[...] = h
    c_out_ref[...] = c


def prepare_params(w_ih, w_hh, b_ih, b_hh):
    """One-time weight prep (hoisted out of the per-rollout critical path).

    Transposes PyTorch-layout weights, combines biases, and pre-scales the
    g-gate (columns 2H:3H) by 2 so that tanh(x) == 2*sigmoid(2x) - 1 can be
    computed from a single full-width sigmoid in the kernel.
    """
    H4 = w_ih.shape[0]
    H = H4 // 4
    col = jnp.arange(H4)
    scale = jnp.where((col >= 2 * H) & (col < 3 * H), 2.0, 1.0).astype(jnp.float32)
    wx = (jnp.transpose(w_ih).astype(jnp.float32)) * scale[None, :]   # (K, 4H)
    wh = (jnp.transpose(w_hh).astype(jnp.float32)) * scale[None, :]   # (H, 4H)
    b = ((b_ih + b_hh).astype(jnp.float32) * scale).reshape(1, H4)    # (1, 4H)
    return wx, wh, b


@jax.jit
def history_encoder_hl_rollout(x_seq, mask_seq, h0, c0, wx, wh, b):
    """Run T chained HistoryEncoder_HL.forward steps in one Pallas kernel.

    Args:
      x_seq:    (T, B, rel_dim) f32   prev_action per step
      mask_seq: (T, B, 1) bool        True == NO_OP per step
      h0, c0:   (B, state_dim) f32    initial hidden/cell state (set_hiddenx)
      wx, wh, b: outputs of prepare_params
    Returns:
      h_seq (T, B, H)  -- hx returned by forward() at each step
      h_T, c_T (B, H)  -- final state
    """
    T, B, K = x_seq.shape
    H = h0.shape[-1]

    x_flat = x_seq.astype(jnp.float32).reshape(T * B, K)
    mask_flat = mask_seq.astype(jnp.float32).reshape(T * B, 1)

    kernel = functools.partial(_lstm_rollout_kernel,
                               state_dim=H, seq_len=T, batch=B)
    vmem = pl.BlockSpec(memory_space=pltpu.MemorySpace.VMEM)

    h_seq_flat, h_T, c_T = pl.pallas_call(
        kernel,
        out_shape=(jax.ShapeDtypeStruct((T * B, H), jnp.float32),
                   jax.ShapeDtypeStruct((B, H), jnp.float32),
                   jax.ShapeDtypeStruct((B, H), jnp.float32)),
        in_specs=[vmem] * 7,
        out_specs=(vmem, vmem, vmem),
        scratch_shapes=[pltpu.VMEM((T * B, 4 * H), jnp.float32)],
    )(x_flat, mask_flat,
      h0.astype(jnp.float32), c0.astype(jnp.float32), wx, wh, b)

    return h_seq_flat.reshape(T, B, H), h_T, c_T


def _reference_rollout(x_seq, mask_seq, h0, c0, w_ih, w_hh, b_ih, b_hh):
    """Pure-JAX reference of T chained torch.nn.LSTMCell steps + masked update."""
    H = h0.shape[-1]
    h, c = h0, c0
    hs = []
    for t in range(x_seq.shape[0]):
        gates = x_seq[t] @ w_ih.T + b_ih + h @ w_hh.T + b_hh
        i = jax.nn.sigmoid(gates[:, 0:H])
        f = jax.nn.sigmoid(gates[:, H:2 * H])
        g = jnp.tanh(gates[:, 2 * H:3 * H])
        o = jax.nn.sigmoid(gates[:, 3 * H:4 * H])
        c_new = f * c + i * g
        h_new = o * jnp.tanh(c_new)
        h = jnp.where(mask_seq[t], h, h_new)
        c = jnp.where(mask_seq[t], c, c_new)
        hs.append(h)
    return jnp.stack(hs), h, c


if __name__ == "__main__":
    # config-equivalent small shapes
    batch = 8
    rel_dim = 32        # config['rel_dim']
    state_dim = 32      # config['state_dim']
    seq_len = 8         # number of chained forward() calls fused into one kernel

    key = jax.random.PRNGKey(0)
    k = jax.random.split(key, 6)

    # PyTorch LSTMCell init: U(-1/sqrt(H), 1/sqrt(H))
    bound = 1.0 / (state_dim ** 0.5)
    w_ih = jax.random.uniform(k[0], (4 * state_dim, rel_dim),
                              minval=-bound, maxval=bound, dtype=jnp.float32)
    w_hh = jax.random.uniform(k[1], (4 * state_dim, state_dim),
                              minval=-bound, maxval=bound, dtype=jnp.float32)
    b_ih = jax.random.uniform(k[2], (4 * state_dim,),
                              minval=-bound, maxval=bound, dtype=jnp.float32)
    b_hh = jax.random.uniform(k[3], (4 * state_dim,),
                              minval=-bound, maxval=bound, dtype=jnp.float32)

    # rollout inputs: per-step prev_action and NO_OP masks; zero-init state
    x_seq = jax.random.normal(k[4], (seq_len, batch, rel_dim), dtype=jnp.float32)
    mask_seq = jax.random.bernoulli(k[5], 0.5, (seq_len, batch, 1))      # bool
    h0 = jnp.zeros((batch, state_dim), jnp.float32)                      # set_hiddenx
    c0 = jnp.zeros((batch, state_dim), jnp.float32)

    # one-time weight prep (hoisted out of the step loop)
    wx, wh, b = prepare_params(w_ih, w_hh, b_ih, b_hh)

    h_seq, h_T, c_T = history_encoder_hl_rollout(x_seq, mask_seq, h0, c0, wx, wh, b)
    jax.block_until_ready((h_seq, h_T, c_T))

    # correctness check vs pure-JAX reference (original two-matmul / exact-tanh form)
    r_hseq, r_hT, r_cT = _reference_rollout(x_seq, mask_seq, h0, c0,
                                            w_ih, w_hh, b_ih, b_hh)
    assert jnp.allclose(h_seq, r_hseq, atol=1e-4), "h_seq mismatch"
    assert jnp.allclose(h_T, r_hT, atol=1e-4), "final hx mismatch"
    assert jnp.allclose(c_T, r_cT, atol=1e-4), "final cx mismatch"

    print("KERNEL_OK")
</pallas_src>

<mosaic_0001>
module attributes {stable_mosaic.version = 11 : i64} {
  func.func @_lstm_rollout_kernel(%arg0: memref<64x32xf32, #tpu.memory_space<vmem>>, %arg1: memref<64x1xf32, #tpu.memory_space<vmem>>, %arg2: memref<8x32xf32, #tpu.memory_space<vmem>>, %arg3: memref<8x32xf32, #tpu.memory_space<vmem>>, %arg4: memref<32x128xf32, #tpu.memory_space<vmem>>, %arg5: memref<32x128xf32, #tpu.memory_space<vmem>>, %arg6: memref<1x128xf32, #tpu.memory_space<vmem>>, %arg7: memref<64x32xf32, #tpu.memory_space<vmem>>, %arg8: memref<8x32xf32, #tpu.memory_space<vmem>>, %arg9: memref<8x32xf32, #tpu.memory_space<vmem>>, %arg10: memref<64x128xf32, #tpu.memory_space<vmem>>) attributes {dimension_semantics = [], scalar_prefetch = 0 : i64, scratch_operands = 1 : i64, tpu.core_type = #tpu.core_type<tc>} {
    %c0 = arith.constant 0 : index
    %c0_0 = arith.constant 0 : index
    %0 = vector.load %arg0[%c0, %c0_0] : memref<64x32xf32, #tpu.memory_space<vmem>>, vector<64x32xf32>
    %c0_1 = arith.constant 0 : index
    %c0_2 = arith.constant 0 : index
    %1 = vector.load %arg4[%c0_1, %c0_2] : memref<32x128xf32, #tpu.memory_space<vmem>>, vector<32x128xf32>
    %cst = arith.constant dense<0.000000e+00> : vector<64x128xf32>
    %2 = tpu.matmul %0, %1, %cst {dimension_numbers = #tpu.dot_dimension_numbers<[1], [0], [0], [1], [0, 0, 1, 1], [], []>} : vector<64x32xf32>, vector<32x128xf32>, vector<64x128xf32> -> vector<64x128xf32>
    %c0_3 = arith.constant 0 : index
    %c0_4 = arith.constant 0 : index
    %3 = vector.load %arg6[%c0_3, %c0_4] : memref<1x128xf32, #tpu.memory_space<vmem>>, vector<1x128xf32>
    %4 = vector.broadcast %3 : vector<1x128xf32> to vector<64x128xf32>
    %5 = arith.addf %2, %4 : vector<64x128xf32>
    %c0_5 = arith.constant 0 : index
    %c0_6 = arith.constant 0 : index
    %6 = vector.load %arg10[%c0_5, %c0_6] : memref<64x128xf32, #tpu.memory_space<vmem>>, vector<64x128xf32>
    tpu.vector_store %arg10[%c0_5, %c0_6], %5 {strides = array<i32>} : memref<64x128xf32, #tpu.memory_space<vmem>>, vector<64x128xf32>,
    %c0_7 = arith.constant 0 : index
    %c0_8 = arith.constant 0 : index
    %7 = vector.load %arg5[%c0_7, %c0_8] : memref<32x128xf32, #tpu.memory_space<vmem>>, vector<32x128xf32>
    %8 = tpu.iota {dimensions = array<i32: 1>} : vector<8x128xi32>
    %c64_i32 = arith.constant 64 : i32
    %9 = vector.broadcast %c64_i32 : i32 to vector<8x128xi32>
    %10 = arith.cmpi sge, %8, %9 : vector<8x128xi32>
    %c96_i32 = arith.constant 96 : i32
    %11 = vector.broadcast %c96_i32 : i32 to vector<8x128xi32>
    %12 = arith.cmpi slt, %8, %11 : vector<8x128xi32>
    %13 = arith.andi %10, %12 : vector<8x128xi1>
    %c0_9 = arith.constant 0 : index
    %c0_10 = arith.constant 0 : index
    %14 = vector.load %arg2[%c0_9, %c0_10] : memref<8x32xf32, #tpu.memory_space<vmem>>, vector<8x32xf32>
    %c0_11 = arith.constant 0 : index
    %c0_12 = arith.constant 0 : index
    %15 = vector.load %arg3[%c0_11, %c0_12] : memref<8x32xf32, #tpu.memory_space<vmem>>, vector<8x32xf32>
    %c0_i32 = arith.constant 0 : i32
    %c8_i32 = arith.constant 8 : i32
    %16 = arith.muli %c0_i32, %c8_i32 : i32
    %17 = tpu.assume_multiple %16, 8 : i32
    %18 = arith.index_cast %17 : i32 to index
    %c0_13 = arith.constant 0 : index
    %19 = vector.load %arg10[%18, %c0_13] : memref<64x128xf32, #tpu.memory_space<vmem>>, vector<8x128xf32>
    %cst_14 = arith.constant dense<0.000000e+00> : vector<8x128xf32>
    %20 = tpu.matmul %14, %7, %cst_14 {dimension_numbers = #tpu.dot_dimension_numbers<[1], [0], [0], [1], [0, 0, 1, 1], [], []>} : vector<8x32xf32>, vector<32x128xf32>, vector<8x128xf32> -> vector<8x128xf32>
    %21 = arith.addf %19, %20 : vector<8x128xf32>
    %22 = arith.negf %21 : vector<8x128xf32>
    %23 = math.exp %22 : vector<8x128xf32>
    %cst_15 = arith.constant 1.000000e+00 : f32
    %24 = vector.broadcast %cst_15 : f32 to vector<8x128xf32>
    %25 = arith.addf %24, %23 : vector<8x128xf32>
    %26 = arith.divf %24, %25 : vector<8x128xf32>
    %cst_16 = arith.constant 2.000000e+00 : f32
    %27 = vector.broadcast %cst_16 : f32 to vector<8x128xf32>
    %28 = arith.mulf %27, %26 : vector<8x128xf32>
    %cst_17 = arith.constant 1.000000e+00 : f32
    %29 = vector.broadcast %cst_17 : f32 to vector<8x128xf32>
    %30 = arith.subf %28, %29 : vector<8x128xf32>
    %31 = arith.select %13, %30, %26 : vector<8x128xi1>, vector<8x128xf32>
    %32 = vector.extract_strided_slice %31 {offsets = [0, 0], sizes = [8, 32], strides = [1, 1]} : vector<8x128xf32> to vector<8x32xf32>
    %33 = vector.extract_strided_slice %31 {offsets = [0, 32], sizes = [8, 32], strides = [1, 1]} : vector<8x128xf32> to vector<8x32xf32>
    %34 = vector.extract_strided_slice %31 {offsets = [0, 64], sizes = [8, 32], strides = [1, 1]} : vector<8x128xf32> to vector<8x32xf32>
    %35 = vector.extract_strided_slice %31 {offsets = [0, 96], sizes = [8, 32], strides = [1, 1]} : vector<8x128xf32> to vector<8x32xf32>
    %36 = arith.mulf %33, %15 : vector<8x32xf32>
    %37 = arith.mulf %32, %34 : vector<8x32xf32>
    %38 = arith.addf %36, %37 : vector<8x32xf32>
    %39 = math.tanh %38 : vector<8x32xf32>
    %40 = arith.mulf %35, %39 : vector<8x32xf32>
    %41 = arith.index_cast %17 : i32 to index
    %c0_18 = arith.constant 0 : index
    %42 = vector.load %arg1[%41, %c0_18] : memref<64x1xf32, #tpu.memory_space<vmem>>, vector<8x1xf32>
    %cst_19 = arith.constant 5.000000e-01 : f32
    %43 = vector.broadcast %cst_19 : f32 to vector<8x1xf32>
    %44 = arith.cmpf ogt, %42, %43 : vector<8x1xf32>
    %45 = vector.shape_cast %44 : vector<8x1xi1> to vector<8x1xi1>
    %46 = vector.broadcast %45 : vector<8x1xi1> to vector<8x32xi1>
    %47 = arith.select %46, %14, %40 : vector<8x32xi1>, vector<8x32xf32>
    %48 = vector.shape_cast %44 : vector<8x1xi1> to vector<8x1xi1>
    %49 = vector.broadcast %48 : vector<8x1xi1> to vector<8x32xi1>
    %50 = arith.select %49, %15, %38 : vector<8x32xi1>, vector<8x32xf32>
    %51 = arith.index_cast %17 : i32 to index
    %c0_20 = arith.constant 0 : index
    %52 = vector.load %arg7[%51, %c0_20] : memref<64x32xf32, #tpu.memory_space<vmem>>, vector<8x32xf32>
    tpu.vector_store %arg7[%51, %c0_20], %47 {strides = array<i32>} : memref<64x32xf32, #tpu.memory_space<vmem>>, vector<8x32xf32>,
    %c1_i32 = arith.constant 1 : i32
    %c8_i32_21 = arith.constant 8 : i32
    %53 = arith.muli %c1_i32, %c8_i32_21 : i32
    %54 = tpu.assume_multiple %53, 8 : i32
    %55 = arith.index_cast %54 : i32 to index
    %c0_22 = arith.constant 0 : index
    %56 = vector.load %arg10[%55, %c0_22] : memref<64x128xf32, #tpu.memory_space<vmem>>, vector<8x128xf32>
    %cst_23 = arith.constant dense<0.000000e+00> : vector<8x128xf32>
    %57 = tpu.matmul %47, %7, %cst_23 {dimension_numbers = #tpu.dot_dimension_numbers<[1], [0], [0], [1], [0, 0, 1, 1], [], []>} : vector<8x32xf32>, vector<32x128xf32>, vector<8x128xf32> -> vector<8x128xf32>
    %58 = arith.addf %56, %57 : vector<8x128xf32>
    %59 = arith.negf %58 : vector<8x128xf32>
    %60 = math.exp %59 : vector<8x128xf32>
    %cst_24 = arith.constant 1.000000e+00 : f32
    %61 = vector.broadcast %cst_24 : f32 to vector<8x128xf32>
    %62 = arith.addf %61, %60 : vector<8x128xf32>
    %63 = arith.divf %61, %62 : vector<8x128xf32>
    %cst_25 = arith.constant 2.000000e+00 : f32
    %64 = vector.broadcast %cst_25 : f32 to vector<8x128xf32>
    %65 = arith.mulf %64, %63 : vector<8x128xf32>
    %cst_26 = arith.constant 1.000000e+00 : f32
    %66 = vector.broadcast %cst_26 : f32 to vector<8x128xf32>
    %67 = arith.subf %65, %66 : vector<8x128xf32>
    %68 = arith.select %13, %67, %63 : vector<8x128xi1>, vector<8x128xf32>
    %69 = vector.extract_strided_slice %68 {offsets = [0, 0], sizes = [8, 32], strides = [1, 1]} : vector<8x128xf32> to vector<8x32xf32>
    %70 = vector.extract_strided_slice %68 {offsets = [0, 32], sizes = [8, 32], strides = [1, 1]} : vector<8x128xf32> to vector<8x32xf32>
    %71 = vector.extract_strided_slice %68 {offsets = [0, 64], sizes = [8, 32], strides = [1, 1]} : vector<8x128xf32> to vector<8x32xf32>
    %72 = vector.extract_strided_slice %68 {offsets = [0, 96], sizes = [8, 32], strides = [1, 1]} : vector<8x128xf32> to vector<8x32xf32>
    %73 = arith.mulf %70, %50 : vector<8x32xf32>
    %74 = arith.mulf %69, %71 : vector<8x32xf32>
    %75 = arith.addf %73, %74 : vector<8x32xf32>
    %76 = math.tanh %75 : vector<8x32xf32>
    %77 = arith.mulf %72, %76 : vector<8x32xf32>
    %78 = arith.index_cast %54 : i32 to index
    %c0_27 = arith.constant 0 : index
    %79 = vector.load %arg1[%78, %c0_27] : memref<64x1xf32, #tpu.memory_space<vmem>>, vector<8x1xf32>
    %cst_28 = arith.constant 5.000000e-01 : f32
    %80 = vector.broadcast %cst_28 : f32 to vector<8x1xf32>
    %81 = arith.cmpf ogt, %79, %80 : vector<8x1xf32>
    %82 = vector.shape_cast %81 : vector<8x1xi1> to vector<8x1xi1>
    %83 = vector.broadcast %82 : vector<8x1xi1> to vector<8x32xi1>
    %84 = arith.select %83, %47, %77 : vector<8x32xi1>, vector<8x32xf32>
    %85 = vector.shape_cast %81 : vector<8x1xi1> to vector<8x1xi1>
    %86 = vector.broadcast %85 : vector<8x1xi1> to vector<8x32xi1>
    %87 = arith.select %86, %50, %75 : vector<8x32xi1>, vector<8x32xf32>
    %88 = arith.index_cast %54 : i32 to index
    %c0_29 = arith.constant 0 : index
    %89 = vector.load %arg7[%88, %c0_29] : memref<64x32xf32, #tpu.memory_space<vmem>>, vector<8x32xf32>
    tpu.vector_store %arg7[%88, %c0_29], %84 {strides = array<i32>} : memref<64x32xf32, #tpu.memory_space<vmem>>, vector<8x32xf32>,
    %c2_i32 = arith.constant 2 : i32
    %c8_i32_30 = arith.constant 8 : i32
    %90 = arith.muli %c2_i32, %c8_i32_30 : i32
    %91 = tpu.assume_multiple %90, 8 : i32
    %92 = arith.index_cast %91 : i32 to index
    %c0_31 = arith.constant 0 : index
    %93 = vector.load %arg10[%92, %c0_31] : memref<64x128xf32, #tpu.memory_space<vmem>>, vector<8x128xf32>
    %cst_32 = arith.constant dense<0.000000e+00> : vector<8x128xf32>
    %94 = tpu.matmul %84, %7, %cst_32 {dimension_numbers = #tpu.dot_dimension_numbers<[1], [0], [0], [1], [0, 0, 1, 1], [], []>} : vector<8x32xf32>, vector<32x128xf32>, vector<8x128xf32> -> vector<8x128xf32>
    %95 = arith.addf %93, %94 : vector<8x128xf32>
    %96 = arith.negf %95 : vector<8x128xf32>
    %97 = math.exp %96 : vector<8x128xf32>
    %cst_33 = arith.constant 1.000000e+00 : f32
    %98 = vector.broadcast %cst_33 : f32 to vector<8x128xf32>
    %99 = arith.addf %98, %97 : vector<8x128xf32>
    %100 = arith.divf %98, %99 : vector<8x128xf32>
    %cst_34 = arith.constant 2.000000e+00 : f32
    %101 = vector.broadcast %cst_34 : f32 to vector<8x128xf32>
    %102 = arith.mulf %101, %100 : vector<8x128xf32>
    %cst_35 = arith.constant 1.000000e+00 : f32
    %103 = vector.broadcast %cst_35 : f32 to vector<8x128xf32>
    %104 = arith.subf %102, %103 : vector<8x128xf32>
    %105 = arith.select %13, %104, %100 : vector<8x128xi1>, vector<8x128xf32>
    %106 = vector.extract_strided_slice %105 {offsets = [0, 0], sizes = [8, 32], strides = [1, 1]} : vector<8x128xf32> to vector<8x32xf32>
    %107 = vector.extract_strided_slice %105 {offsets = [0, 32], sizes = [8, 32], strides = [1, 1]} : vector<8x128xf32> to vector<8x32xf32>
    %108 = vector.extract_strided_slice %105 {offsets = [0, 64], sizes = [8, 32], strides = [1, 1]} : vector<8x128xf32> to vector<8x32xf32>
    %109 = vector.extract_strided_slice %105 {offsets = [0, 96], sizes = [8, 32], strides = [1, 1]} : vector<8x128xf32> to vector<8x32xf32>
    %110 = arith.mulf %107, %87 : vector<8x32xf32>
    %111 = arith.mulf %106, %108 : vector<8x32xf32>
    %112 = arith.addf %110, %111 : vector<8x32xf32>
    %113 = math.tanh %112 : vector<8x32xf32>
    %114 = arith.mulf %109, %113 : vector<8x32xf32>
    %115 = arith.index_cast %91 : i32 to index
    %c0_36 = arith.constant 0 : index
    %116 = vector.load %arg1[%115, %c0_36] : memref<64x1xf32, #tpu.memory_space<vmem>>, vector<8x1xf32>
    %cst_37 = arith.constant 5.000000e-01 : f32
    %117 = vector.broadcast %cst_37 : f32 to vector<8x1xf32>
    %118 = arith.cmpf ogt, %116, %117 : vector<8x1xf32>
    %119 = vector.shape_cast %118 : vector<8x1xi1> to vector<8x1xi1>
    %120 = vector.broadcast %119 : vector<8x1xi1> to vector<8x32xi1>
    %121 = arith.select %120, %84, %114 : vector<8x32xi1>, vector<8x32xf32>
    %122 = vector.shape_cast %118 : vector<8x1xi1> to vector<8x1xi1>
    %123 = vector.broadcast %122 : vector<8x1xi1> to vector<8x32xi1>
    %124 = arith.select %123, %87, %112 : vector<8x32xi1>, vector<8x32xf32>
    %125 = arith.index_cast %91 : i32 to index
    %c0_38 = arith.constant 0 : index
    %126 = vector.load %arg7[%125, %c0_38] : memref<64x32xf32, #tpu.memory_space<vmem>>, vector<8x32xf32>
    tpu.vector_store %arg7[%125, %c0_38], %121 {strides = array<i32>} : memref<64x32xf32, #tpu.memory_space<vmem>>, vector<8x32xf32>,
    %c3_i32 = arith.constant 3 : i32
    %c8_i32_39 = arith.constant 8 : i32
    %127 = arith.muli %c3_i32, %c8_i32_39 : i32
    %128 = tpu.assume_multiple %127, 8 : i32
    %129 = arith.index_cast %128 : i32 to index
    %c0_40 = arith.constant 0 : index
    %130 = vector.load %arg10[%129, %c0_40] : memref<64x128xf32, #tpu.memory_space<vmem>>, vector<8x128xf32>
    %cst_41 = arith.constant dense<0.000000e+00> : vector<8x128xf32>
    %131 = tpu.matmul %121, %7, %cst_41 {dimension_numbers = #tpu.dot_dimension_numbers<[1], [0], [0], [1], [0, 0, 1, 1], [], []>} : vector<8x32xf32>, vector<32x128xf32>, vector<8x128xf32> -> vector<8x128xf32>
    %132 = arith.addf %130, %131 : vector<8x128xf32>
    %133 = arith.negf %132 : vector<8x128xf32>
    %134 = math.exp %133 : vector<8x128xf32>
    %cst_42 = arith.constant 1.000000e+00 : f32
    %135 = vector.broadcast %cst_42 : f32 to vector<8x128xf32>
    %136 = arith.addf %135, %134 : vector<8x128xf32>
    %137 = arith.divf %135, %136 : vector<8x128xf32>
    %cst_43 = arith.constant 2.000000e+00 : f32
    %138 = vector.broadcast %cst_43 : f32 to vector<8x128xf32>
    %139 = arith.mulf %138, %137 : vector<8x128xf32>
    %cst_44 = arith.constant 1.000000e+00 : f32
    %140 = vector.broadcast %cst_44 : f32 to vector<8x128xf32>
    %141 = arith.subf %139, %140 : vector<8x128xf32>
    %142 = arith.select %13, %141, %137 : vector<8x128xi1>, vector<8x128xf32>
    %143 = vector.extract_strided_slice %142 {offsets = [0, 0], sizes = [8, 32], strides = [1, 1]} : vector<8x128xf32> to vector<8x32xf32>
    %144 = vector.extract_strided_slice %142 {offsets = [0, 32], sizes = [8, 32], strides = [1, 1]} : vector<8x128xf32> to vector<8x32xf32>
    %145 = vector.extract_strided_slice %142 {offsets = [0, 64], sizes = [8, 32], strides = [1, 1]} : vector<8x128xf32> to vector<8x32xf32>
    %146 = vector.extract_strided_slice %142 {offsets = [0, 96], sizes = [8, 32], strides = [1, 1]} : vector<8x128xf32> to vector<8x32xf32>
    %147 = arith.mulf %144, %124 : vector<8x32xf32>
    %148 = arith.mulf %143, %145 : vector<8x32xf32>
    %149 = arith.addf %147, %148 : vector<8x32xf32>
    %150 = math.tanh %149 : vector<8x32xf32>
    %151 = arith.mulf %146, %150 : vector<8x32xf32>
    %152 = arith.index_cast %128 : i32 to index
    %c0_45 = arith.constant 0 : index
    %153 = vector.load %arg1[%152, %c0_45] : memref<64x1xf32, #tpu.memory_space<vmem>>, vector<8x1xf32>
    %cst_46 = arith.constant 5.000000e-01 : f32
    %154 = vector.broadcast %cst_46 : f32 to vector<8x1xf32>
    %155 = arith.cmpf ogt, %153, %154 : vector<8x1xf32>
    %156 = vector.shape_cast %155 : vector<8x1xi1> to vector<8x1xi1>
    %157 = vector.broadcast %156 : vector<8x1xi1> to vector<8x32xi1>
    %158 = arith.select %157, %121, %151 : vector<8x32xi1>, vector<8x32xf32>
    %159 = vector.shape_cast %155 : vector<8x1xi1> to vector<8x1xi1>
    %160 = vector.broadcast %159 : vector<8x1xi1> to vector<8x32xi1>
    %161 = arith.select %160, %124, %149 : vector<8x32xi1>, vector<8x32xf32>
    %162 = arith.index_cast %128 : i32 to index
    %c0_47 = arith.constant 0 : index
    %163 = vector.load %arg7[%162, %c0_47] : memref<64x32xf32, #tpu.memory_space<vmem>>, vector<8x32xf32>
    tpu.vector_store %arg7[%162, %c0_47], %158 {strides = array<i32>} : memref<64x32xf32, #tpu.memory_space<vmem>>, vector<8x32xf32>,
    %c4_i32 = arith.constant 4 : i32
    %c8_i32_48 = arith.constant 8 : i32
    %164 = arith.muli %c4_i32, %c8_i32_48 : i32
    %165 = tpu.assume_multiple %164, 8 : i32
    %166 = arith.index_cast %165 : i32 to index
    %c0_49 = arith.constant 0 : index
    %167 = vector.load %arg10[%166, %c0_49] : memref<64x128xf32, #tpu.memory_space<vmem>>, vector<8x128xf32>
    %cst_50 = arith.constant dense<0.000000e+00> : vector<8x128xf32>
    %168 = tpu.matmul %158, %7, %cst_50 {dimension_numbers = #tpu.dot_dimension_numbers<[1], [0], [0], [1], [0, 0, 1, 1], [], []>} : vector<8x32xf32>, vector<32x128xf32>, vector<8x128xf32> -> vector<8x128xf32>
    %169 = arith.addf %167, %168 : vector<8x128xf32>
    %170 = arith.negf %169 : vector<8x128xf32>
    %171 = math.exp %170 : vector<8x128xf32>
    %cst_51 = arith.constant 1.000000e+00 : f32
    %172 = vector.broadcast %cst_51 : f32 to vector<8x128xf32>
    %173 = arith.addf %172, %171 : vector<8x128xf32>
    %174 = arith.divf %172, %173 : vector<8x128xf32>
    %cst_52 = arith.constant 2.000000e+00 : f32
    %175 = vector.broadcast %cst_52 : f32 to vector<8x128xf32>
    %176 = arith.mulf %175, %174 : vector<8x128xf32>
    %cst_53 = arith.constant 1.000000e+00 : f32
    %177 = vector.broadcast %cst_53 : f32 to vector<8x128xf32>
    %178 = arith.subf %176, %177 : vector<8x128xf32>
    %179 = arith.select %13, %178, %174 : vector<8x128xi1>, vector<8x128xf32>
    %180 = vector.extract_strided_slice %179 {offsets = [0, 0], sizes = [8, 32], strides = [1, 1]} : vector<8x128xf32> to vector<8x32xf32>
    %181 = vector.extract_strided_slice %179 {offsets = [0, 32], sizes = [8, 32], strides = [1, 1]} : vector<8x128xf32> to vector<8x32xf32>
    %182 = vector.extract_strided_slice %179 {offsets = [0, 64], sizes = [8, 32], strides = [1, 1]} : vector<8x128xf32> to vector<8x32xf32>
    %183 = vector.extract_strided_slice %179 {offsets = [0, 96], sizes = [8, 32], strides = [1, 1]} : vector<8x128xf32> to vector<8x32xf32>
    %184 = arith.mulf %181, %161 : vector<8x32xf32>
    %185 = arith.mulf %180, %182 : vector<8x32xf32>
    %186 = arith.addf %184, %185 : vector<8x32xf32>
    %187 = math.tanh %186 : vector<8x32xf32>
    %188 = arith.mulf %183, %187 : vector<8x32xf32>
    %189 = arith.index_cast %165 : i32 to index
    %c0_54 = arith.constant 0 : index
    %190 = vector.load %arg1[%189, %c0_54] : memref<64x1xf32, #tpu.memory_space<vmem>>, vector<8x1xf32>
    %cst_55 = arith.constant 5.000000e-01 : f32
    %191 = vector.broadcast %cst_55 : f32 to vector<8x1xf32>
    %192 = arith.cmpf ogt, %190, %191 : vector<8x1xf32>
    %193 = vector.shape_cast %192 : vector<8x1xi1> to vector<8x1xi1>
    %194 = vector.broadcast %193 : vector<8x1xi1> to vector<8x32xi1>
    %195 = arith.select %194, %158, %188 : vector<8x32xi1>, vector<8x32xf32>
    %196 = vector.shape_cast %192 : vector<8x1xi1> to vector<8x1xi1>
    %197 = vector.broadcast %196 : vector<8x1xi1> to vector<8x32xi1>
    %198 = arith.select %197, %161, %186 : vector<8x32xi1>, vector<8x32xf32>
    %199 = arith.index_cast %165 : i32 to index
    %c0_56 = arith.constant 0 : index
    %200 = vector.load %arg7[%199, %c0_56] : memref<64x32xf32, #tpu.memory_space<vmem>>, vector<8x32xf32>
    tpu.vector_store %arg7[%199, %c0_56], %195 {strides = array<i32>} : memref<64x32xf32, #tpu.memory_space<vmem>>, vector<8x32xf32>,
    %c5_i32 = arith.constant 5 : i32
    %c8_i32_57 = arith.constant 8 : i32
    %201 = arith.muli %c5_i32, %c8_i32_57 : i32
    %202 = tpu.assume_multiple %201, 8 : i32
    %203 = arith.index_cast %202 : i32 to index
    %c0_58 = arith.constant 0 : index
    %204 = vector.load %arg10[%203, %c0_58] : memref<64x128xf32, #tpu.memory_space<vmem>>, vector<8x128xf32>
    %cst_59 = arith.constant dense<0.000000e+00> : vector<8x128xf32>
    %205 = tpu.matmul %195, %7, %cst_59 {dimension_numbers = #tpu.dot_dimension_numbers<[1], [0], [0], [1], [0, 0, 1, 1], [], []>} : vector<8x32xf32>, vector<32x128xf32>, vector<8x128xf32> -> vector<8x128xf32>
    %206 = arith.addf %204, %205 : vector<8x128xf32>
    %207 = arith.negf %206 : vector<8x128xf32>
    %208 = math.exp %207 : vector<8x128xf32>
    %cst_60 = arith.constant 1.000000e+00 : f32
    %209 = vector.broadcast %cst_60 : f32 to vector<8x128xf32>
    %210 = arith.addf %209, %208 : vector<8x128xf32>
    %211 = arith.divf %209, %210 : vector<8x128xf32>
    %cst_61 = arith.constant 2.000000e+00 : f32
    %212 = vector.broadcast %cst_61 : f32 to vector<8x128xf32>
    %213 = arith.mulf %212, %211 : vector<8x128xf32>
    %cst_62 = arith.constant 1.000000e+00 : f32
    %214 = vector.broadcast %cst_62 : f32 to vector<8x128xf32>
    %215 = arith.subf %213, %214 : vector<8x128xf32>
    %216 = arith.select %13, %215, %211 : vector<8x128xi1>, vector<8x128xf32>
    %217 = vector.extract_strided_slice %216 {offsets = [0, 0], sizes = [8, 32], strides = [1, 1]} : vector<8x128xf32> to vector<8x32xf32>
    %218 = vector.extract_strided_slice %216 {offsets = [0, 32], sizes = [8, 32], strides = [1, 1]} : vector<8x128xf32> to vector<8x32xf32>
    %219 = vector.extract_strided_slice %216 {offsets = [0, 64], sizes = [8, 32], strides = [1, 1]} : vector<8x128xf32> to vector<8x32xf32>
    %220 = vector.extract_strided_slice %216 {offsets = [0, 96], sizes = [8, 32], strides = [1, 1]} : vector<8x128xf32> to vector<8x32xf32>
    %221 = arith.mulf %218, %198 : vector<8x32xf32>
    %222 = arith.mulf %217, %219 : vector<8x32xf32>
    %223 = arith.addf %221, %222 : vector<8x32xf32>
    %224 = math.tanh %223 : vector<8x32xf32>
    %225 = arith.mulf %220, %224 : vector<8x32xf32>
    %226 = arith.index_cast %202 : i32 to index
    %c0_63 = arith.constant 0 : index
    %227 = vector.load %arg1[%226, %c0_63] : memref<64x1xf32, #tpu.memory_space<vmem>>, vector<8x1xf32>
    %cst_64 = arith.constant 5.000000e-01 : f32
    %228 = vector.broadcast %cst_64 : f32 to vector<8x1xf32>
    %229 = arith.cmpf ogt, %227, %228 : vector<8x1xf32>
    %230 = vector.shape_cast %229 : vector<8x1xi1> to vector<8x1xi1>
    %231 = vector.broadcast %230 : vector<8x1xi1> to vector<8x32xi1>
    %232 = arith.select %231, %195, %225 : vector<8x32xi1>, vector<8x32xf32>
    %233 = vector.shape_cast %229 : vector<8x1xi1> to vector<8x1xi1>
    %234 = vector.broadcast %233 : vector<8x1xi1> to vector<8x32xi1>
    %235 = arith.select %234, %198, %223 : vector<8x32xi1>, vector<8x32xf32>
    %236 = arith.index_cast %202 : i32 to index
    %c0_65 = arith.constant 0 : index
    %237 = vector.load %arg7[%236, %c0_65] : memref<64x32xf32, #tpu.memory_space<vmem>>, vector<8x32xf32>
    tpu.vector_store %arg7[%236, %c0_65], %232 {strides = array<i32>} : memref<64x32xf32, #tpu.memory_space<vmem>>, vector<8x32xf32>,
    %c6_i32 = arith.constant 6 : i32
    %c8_i32_66 = arith.constant 8 : i32
    %238 = arith.muli %c6_i32, %c8_i32_66 : i32
    %239 = tpu.assume_multiple %238, 8 : i32
    %240 = arith.index_cast %239 : i32 to index
    %c0_67 = arith.constant 0 : index
    %241 = vector.load %arg10[%240, %c0_67] : memref<64x128xf32, #tpu.memory_space<vmem>>, vector<8x128xf32>
    %cst_68 = arith.constant dense<0.000000e+00> : vector<8x128xf32>
    %242 = tpu.matmul %232, %7, %cst_68 {dimension_numbers = #tpu.dot_dimension_numbers<[1], [0], [0], [1], [0, 0, 1, 1], [], []>} : vector<8x32xf32>, vector<32x128xf32>, vector<8x128xf32> -> vector<8x128xf32>
    %243 = arith.addf %241, %242 : vector<8x128xf32>
    %244 = arith.negf %243 : vector<8x128xf32>
    %245 = math.exp %244 : vector<8x128xf32>
    %cst_69 = arith.constant 1.000000e+00 : f32
    %246 = vector.broadcast %cst_69 : f32 to vector<8x128xf32>
    %247 = arith.addf %246, %245 : vector<8x128xf32>
    %248 = arith.divf %246, %247 : vector<8x128xf32>
    %cst_70 = arith.constant 2.000000e+00 : f32
    %249 = vector.broadcast %cst_70 : f32 to vector<8x128xf32>
    %250 = arith.mulf %249, %248 : vector<8x128xf32>
    %cst_71 = arith.constant 1.000000e+00 : f32
    %251 = vector.broadcast %cst_71 : f32 to vector<8x128xf32>
    %252 = arith.subf %250, %251 : vector<8x128xf32>
    %253 = arith.select %13, %252, %248 : vector<8x128xi1>, vector<8x128xf32>
    %254 = vector.extract_strided_slice %253 {offsets = [0, 0], sizes = [8, 32], strides = [1, 1]} : vector<8x128xf32> to vector<8x32xf32>
    %255 = vector.extract_strided_slice %253 {offsets = [0, 32], sizes = [8, 32], strides = [1, 1]} : vector<8x128xf32> to vector<8x32xf32>
    %256 = vector.extract_strided_slice %253 {offsets = [0, 64], sizes = [8, 32], strides = [1, 1]} : vector<8x128xf32> to vector<8x32xf32>
    %257 = vector.extract_strided_slice %253 {offsets = [0, 96], sizes = [8, 32], strides = [1, 1]} : vector<8x128xf32> to vector<8x32xf32>
    %258 = arith.mulf %255, %235 : vector<8x32xf32>
    %259 = arith.mulf %254, %256 : vector<8x32xf32>
    %260 = arith.addf %258, %259 : vector<8x32xf32>
    %261 = math.tanh %260 : vector<8x32xf32>
    %262 = arith.mulf %257, %261 : vector<8x32xf32>
    %263 = arith.index_cast %239 : i32 to index
    %c0_72 = arith.constant 0 : index
    %264 = vector.load %arg1[%263, %c0_72] : memref<64x1xf32, #tpu.memory_space<vmem>>, vector<8x1xf32>
    %cst_73 = arith.constant 5.000000e-01 : f32
    %265 = vector.broadcast %cst_73 : f32 to vector<8x1xf32>
    %266 = arith.cmpf ogt, %264, %265 : vector<8x1xf32>
    %267 = vector.shape_cast %266 : vector<8x1xi1> to vector<8x1xi1>
    %268 = vector.broadcast %267 : vector<8x1xi1> to vector<8x32xi1>
    %269 = arith.select %268, %232, %262 : vector<8x32xi1>, vector<8x32xf32>
    %270 = vector.shape_cast %266 : vector<8x1xi1> to vector<8x1xi1>
    %271 = vector.broadcast %270 : vector<8x1xi1> to vector<8x32xi1>
    %272 = arith.select %271, %235, %260 : vector<8x32xi1>, vector<8x32xf32>
    %273 = arith.index_cast %239 : i32 to index
    %c0_74 = arith.constant 0 : index
    %274 = vector.load %arg7[%273, %c0_74] : memref<64x32xf32, #tpu.memory_space<vmem>>, vector<8x32xf32>
    tpu.vector_store %arg7[%273, %c0_74], %269 {strides = array<i32>} : memref<64x32xf32, #tpu.memory_space<vmem>>, vector<8x32xf32>,
    %c7_i32 = arith.constant 7 : i32
    %c8_i32_75 = arith.constant 8 : i32
    %275 = arith.muli %c7_i32, %c8_i32_75 : i32
    %276 = tpu.assume_multiple %275, 8 : i32
    %277 = arith.index_cast %276 : i32 to index
    %c0_76 = arith.constant 0 : index
    %278 = vector.load %arg10[%277, %c0_76] : memref<64x128xf32, #tpu.memory_space<vmem>>, vector<8x128xf32>
    %cst_77 = arith.constant dense<0.000000e+00> : vector<8x128xf32>
    %279 = tpu.matmul %269, %7, %cst_77 {dimension_numbers = #tpu.dot_dimension_numbers<[1], [0], [0], [1], [0, 0, 1, 1], [], []>} : vector<8x32xf32>, vector<32x128xf32>, vector<8x128xf32> -> vector<8x128xf32>
    %280 = arith.addf %278, %279 : vector<8x128xf32>
    %281 = arith.negf %280 : vector<8x128xf32>
    %282 = math.exp %281 : vector<8x128xf32>
    %cst_78 = arith.constant 1.000000e+00 : f32
    %283 = vector.broadcast %cst_78 : f32 to vector<8x128xf32>
    %284 = arith.addf %283, %282 : vector<8x128xf32>
    %285 = arith.divf %283, %284 : vector<8x128xf32>
    %cst_79 = arith.constant 2.000000e+00 : f32
    %286 = vector.broadcast %cst_79 : f32 to vector<8x128xf32>
    %287 = arith.mulf %286, %285 : vector<8x128xf32>
    %cst_80 = arith.constant 1.000000e+00 : f32
    %288 = vector.broadcast %cst_80 : f32 to vector<8x128xf32>
    %289 = arith.subf %287, %288 : vector<8x128xf32>
    %290 = arith.select %13, %289, %285 : vector<8x128xi1>, vector<8x128xf32>
    %291 = vector.extract_strided_slice %290 {offsets = [0, 0], sizes = [8, 32], strides = [1, 1]} : vector<8x128xf32> to vector<8x32xf32>
    %292 = vector.extract_strided_slice %290 {offsets = [0, 32], sizes = [8, 32], strides = [1, 1]} : vector<8x128xf32> to vector<8x32xf32>
    %293 = vector.extract_strided_slice %290 {offsets = [0, 64], sizes = [8, 32], strides = [1, 1]} : vector<8x128xf32> to vector<8x32xf32>
    %294 = vector.extract_strided_slice %290 {offsets = [0, 96], sizes = [8, 32], strides = [1, 1]} : vector<8x128xf32> to vector<8x32xf32>
    %295 = arith.mulf %292, %272 : vector<8x32xf32>
    %296 = arith.mulf %291, %293 : vector<8x32xf32>
    %297 = arith.addf %295, %296 : vector<8x32xf32>
    %298 = math.tanh %297 : vector<8x32xf32>
    %299 = arith.mulf %294, %298 : vector<8x32xf32>
    %300 = arith.index_cast %276 : i32 to index
    %c0_81 = arith.constant 0 : index
    %301 = vector.load %arg1[%300, %c0_81] : memref<64x1xf32, #tpu.memory_space<vmem>>, vector<8x1xf32>
    %cst_82 = arith.constant 5.000000e-01 : f32
    %302 = vector.broadcast %cst_82 : f32 to vector<8x1xf32>
    %303 = arith.cmpf ogt, %301, %302 : vector<8x1xf32>
    %304 = vector.shape_cast %303 : vector<8x1xi1> to vector<8x1xi1>
    %305 = vector.broadcast %304 : vector<8x1xi1> to vector<8x32xi1>
    %306 = arith.select %305, %269, %299 : vector<8x32xi1>, vector<8x32xf32>
    %307 = vector.shape_cast %303 : vector<8x1xi1> to vector<8x1xi1>
    %308 = vector.broadcast %307 : vector<8x1xi1> to vector<8x32xi1>
    %309 = arith.select %308, %272, %297 : vector<8x32xi1>, vector<8x32xf32>
    %310 = arith.index_cast %276 : i32 to index
    %c0_83 = arith.constant 0 : index
    %311 = vector.load %arg7[%310, %c0_83] : memref<64x32xf32, #tpu.memory_space<vmem>>, vector<8x32xf32>
    tpu.vector_store %arg7[%310, %c0_83], %306 {strides = array<i32>} : memref<64x32xf32, #tpu.memory_space<vmem>>, vector<8x32xf32>,
    %c8_i32_84 = arith.constant 8 : i32
    %c0_85 = arith.constant 0 : index
    %c0_86 = arith.constant 0 : index
    %312 = vector.load %arg8[%c0_85, %c0_86] : memref<8x32xf32, #tpu.memory_space<vmem>>, vector<8x32xf32>
    tpu.vector_store %arg8[%c0_85, %c0_86], %306 {strides = array<i32>} : memref<8x32xf32, #tpu.memory_space<vmem>>, vector<8x32xf32>,
    %c0_87 = arith.constant 0 : index
    %c0_88 = arith.constant 0 : index
    %313 = vector.load %arg9[%c0_87, %c0_88] : memref<8x32xf32, #tpu.memory_space<vmem>>, vector<8x32xf32>
    tpu.vector_store %arg9[%c0_87, %c0_88], %309 {strides = array<i32>} : memref<8x32xf32, #tpu.memory_space<vmem>>, vector<8x32xf32>,
    return
  }
}

</mosaic_0001>

<llo_original>
// kernel: history_encoder_hl_rollout.1
$region0: #{history_encoder_hl_rollout.1}
  #allocation0 [shape = 'u32[]', space=smem, size = 0x4, offset = 0x4, fixed_abs, tag = 'smem constant byte address 0x4 - core index']
  #allocation1 [shape = 'u32[72,128]{1,0:T(1,128)}', space=vmem, size = 0x9000, scoped, tag = 'internal scratch']
  #allocation2 [shape = 'f32[64,128]{1,0:T(8,128)}', space=vmem, size = 0x8000, scoped, tag = 'scratch operand']
  %s0 = inlined_call_operand.vmem [shape: f32[64,32], index: 0, kind: input, shape index: {}]
  %s1 = inlined_call_operand.vmem [shape: f32[64,1], index: 1, kind: input, shape index: {}]
  %s2 = inlined_call_operand.vmem [shape: f32[8,32], index: 2, kind: input, shape index: {}]
  %s3 = inlined_call_operand.vmem [shape: f32[8,32], index: 3, kind: input, shape index: {}]
  %s4 = inlined_call_operand.hbm [shape: f32[32,128], index: 4, kind: input, shape index: {}]
  %s5 = inlined_call_operand.hbm [shape: f32[32,128], index: 5, kind: input, shape index: {}]
  %s6 = inlined_call_operand.vmem [shape: f32[1,128], index: 6, kind: input, shape index: {}]
  %s7 = inlined_call_operand.hbm [shape: f32[64,32], index: 7, kind: output, shape index: {0}]
  %s8 = inlined_call_operand.hbm [shape: f32[8,32], index: 8, kind: output, shape index: {1}]
  %s9 = inlined_call_operand.hbm [shape: f32[8,32], index: 9, kind: output, shape index: {2}]
  %10 = xla_tuple %s7, %s8, %s9
  %s11 = sld [smem:[#allocation0]]
  $region62: #{history_encoder_hl_rollout.1} parent=0
    _
  %s13 = ssub.s32 1, %s11
  %s14 = scalar_select 0, %s13, %s11
  $region1: #{history_encoder_hl_rollout.1} parent=0
    #allocation3 [shape = 'u8[16384]{0}', space=vmem, size = 0x4000, scoped, tag = 'input window, operand 4, single buffered']
    #allocation4 [shape = 's32[1]{0}', space=sflag, size = 0x4, scoped, tag = 'scoped memory for history_encoder_hl_rollout.1']
    #allocation5 [shape = 's32[1]{0}', space=sflag, size = 0x4, scoped, tag = 'scoped memory for history_encoder_hl_rollout.1']
    #allocation6 [shape = 'u8[16384]{0}', space=vmem, size = 0x4000, scoped, tag = 'input window, operand 5, single buffered']
    #allocation7 [shape = 's32[1]{0}', space=sflag, size = 0x4, scoped, tag = 'scoped memory for history_encoder_hl_rollout.1']
    #allocation8 [shape = 'u8[32768]{0}', space=vmem, size = 0x8000, scoped, tag = 'output window, operand 0, single buffered']
    #allocation9 [shape = 'u8[4096]{0}', space=vmem, size = 0x1000, scoped, tag = 'output window, operand 1, single buffered']
    #allocation10 [shape = 's32[1]{0}', space=sflag, size = 0x4, scoped, tag = 'scoped memory for history_encoder_hl_rollout.1']
    #allocation11 [shape = 'u8[4096]{0}', space=vmem, size = 0x1000, scoped, tag = 'output window, operand 2, single buffered']
    %15 = vsyncpa [#allocation4], 0
    %16 = vsyncpa [#allocation7], 0
    %17 = vsyncpa [#allocation5], 0
    %18 = vsyncpa [#allocation10], 0
    // Predicated region
    $region2: #{history_encoder_hl_rollout.1} parent=1 // pred_check
      _
    $region3: #{history_encoder_hl_rollout.1} parent=1 // pred_check_branch
      %20 = sbr.rel (0) target = $region5
    $region4: #{history_encoder_hl_rollout.1} parent=1 // pred_region
      _
    $region5: #{history_encoder_hl_rollout.1} parent=1 // pred_fallthru
      _
    // Predicated region
    $region6: #{history_encoder_hl_rollout.1} parent=1 // pred_check
      _
    $region7: #{history_encoder_hl_rollout.1} parent=1 // pred_check_branch
      %22 = sbr.rel (0) target = $region9
    $region8: #{history_encoder_hl_rollout.1} parent=1 // pred_region
      _
    $region9: #{history_encoder_hl_rollout.1} parent=1 // pred_fallthru
      _
    // Predicated region
    $region10: #{history_encoder_hl_rollout.1} parent=1 // pred_check
      _
    $region11: #{history_encoder_hl_rollout.1} parent=1 // pred_check_branch
      %24 = sbr.rel (0) target = $region13
    $region12: #{history_encoder_hl_rollout.1} parent=1 // pred_region
      _
    $region13: #{history_encoder_hl_rollout.1} parent=1 // pred_fallthru
      _
    // Predicated region
    $region14: #{history_encoder_hl_rollout.1} parent=1 // pred_check
      _
    $region15: #{history_encoder_hl_rollout.1} parent=1 // pred_check_branch
      %26 = sbr.rel (0) target = $region17
    $region16: #{history_encoder_hl_rollout.1} parent=1 // pred_region
      _
    $region17: #{history_encoder_hl_rollout.1} parent=1 // pred_fallthru
      _
    // Predicated region
    $region18: #{history_encoder_hl_rollout.1} parent=1 // pred_check
      _
    $region19: #{history_encoder_hl_rollout.1} parent=1 // pred_check_branch
      %28 = sbr.rel (0) target = $region21
    $region20: #{history_encoder_hl_rollout.1} parent=1 // pred_region
      %30 = vsyncadd [#allocation4], 0
      %s31 = sshll.u32 %s4, 4
      %s32 = int_to_ptr.hbm [resolvable:$true] %s31
      %s33 = sshll.u32 [#allocation3], 4
      %s34 = int_to_ptr.vmem [resolvable:$true] %s33
      %39 = dma.hbm_to_vmem [thread:$0]  %s32, 512, %s34, [#allocation4], 128, 128, 8
    $region21: #{history_encoder_hl_rollout.1} parent=1 // pred_fallthru
      _
    // Predicated region
    $region22: #{history_encoder_hl_rollout.1} parent=1 // pred_check
      _
    $region23: #{history_encoder_hl_rollout.1} parent=1 // pred_check_branch
      %41 = sbr.rel (0) target = $region25
    $region24: #{history_encoder_hl_rollout.1} parent=1 // pred_region
      %43 = vsyncadd [#allocation7], 0
      %s44 = sshll.u32 %s5, 4
      %s45 = int_to_ptr.hbm [resolvable:$true] %s44
      %s46 = sshll.u32 [#allocation6], 4
      %s47 = int_to_ptr.vmem [resolvable:$true] %s46
      %52 = dma.hbm_to_vmem [thread:$0]  %s45, 512, %s47, [#allocation7], 128, 128, 8
    $region25: #{history_encoder_hl_rollout.1} parent=1 // pred_fallthru
      _
    // Predicated region
    $region26: #{history_encoder_hl_rollout.1} parent=1 // pred_check
      _
    $region27: #{history_encoder_hl_rollout.1} parent=1 // pred_check_branch
      %54 = sbr.rel (0) target = $region29
    $region28: #{history_encoder_hl_rollout.1} parent=1 // pred_region
      _
    $region29: #{history_encoder_hl_rollout.1} parent=1 // pred_fallthru
      _
    // Predicated region
    $region30: #{history_encoder_hl_rollout.1} parent=1 // pred_check
      _
    $region31: #{history_encoder_hl_rollout.1} parent=1 // pred_check_branch
      %56 = sbr.rel (0) target = $region33
    $region32: #{history_encoder_hl_rollout.1} parent=1 // pred_region
      %58 = dma.done [#allocation4], 512
    $region33: #{history_encoder_hl_rollout.1} parent=1 // pred_fallthru
      _
    // Predicated region
    $region34: #{history_encoder_hl_rollout.1} parent=1 // pred_check
      _
    $region35: #{history_encoder_hl_rollout.1} parent=1 // pred_check_branch
      %60 = sbr.rel (0) target = $region37
    $region36: #{history_encoder_hl_rollout.1} parent=1 // pred_region
      %62 = dma.done [#allocation7], 512
    $region37: #{history_encoder_hl_rollout.1} parent=1 // pred_fallthru
      _
    %v63 = vld [vmem:[%s0] sm:$0xff]
    %v64 = vld [vmem:[%s0 + $0x8] sm:$0xff]
    %v65 = vld [vmem:[%s0 + $0x10] sm:$0xff]
    %v66 = vld [vmem:[%s0 + $0x18] sm:$0xff]
    %v67 = vld [vmem:[%s0 + $0x20] sm:$0xff]
    %v68 = vld [vmem:[%s0 + $0x28] sm:$0xff]
    %v69 = vld [vmem:[%s0 + $0x30] sm:$0xff]
    %v70 = vld [vmem:[%s0 + $0x38] sm:$0xff]
    %v71 = vld [vmem:[#allocation3] sm:$0xff]
    %v72 = vld [vmem:[#allocation3 + $0x8] sm:$0xff]
    %v73 = vld [vmem:[#allocation3 + $0x10] sm:$0xff]
    %v74 = vld [vmem:[#allocation3 + $0x18] sm:$0xff]
    %v75 = vld [vmem:[%s6] sm:$0x1]
    %v77 = vperm.slane %v75, 0
    %vm79 = vcmask 261120
    %v81 = vsel %vm79, %v63, 0
    %v84 = vsel %vm79, %v64, 0
    %v87 = vsel %vm79, %v65, 0
    %v90 = vsel %vm79, %v66, 0
    %v93 = vsel %vm79, %v67, 0
    %v96 = vsel %vm79, %v68, 0
    %v99 = vsel %vm79, %v69, 0
    %v102 = vsel %vm79, %v70, 0
    %104 = vmatpush.msra.mxu0 0.0
    %105 = vmatpush.msra.mxu0 0.0
    %106 = vmatpush.msra.mxu0 0.0
    %107 = vmatpush.msra.mxu0 0.0
    %108 = vmatpush.msra.mxu0 0.0
    %109 = vmatpush.msra.mxu0 0.0
    %110 = vmatpush.msra.mxu0 0.0
    %111 = vmatpush.msra.mxu0 0.0
    %112 = vmatpush.msra.mxu0 0.0
    %113 = vmatpush.msra.mxu0 0.0
    %114 = vmatpush.msra.mxu0 0.0
    %115 = vmatpush.msra.mxu0 0.0
    %116 = vmatpush.msra.mxu0 %v74
    %117 = vmatpush.msra.mxu0 %v73
    %118 = vmatpush.msra.mxu0 %v72
    %119 = vmatpush.msra.mxu0 %v71
    %120 = vmatmul.f32.gmra.mxu0 %v81
    %v121 = vpop.f32.mrf.mxu0
    %v122 = vadd.f32 %v77, %v121
    %123 = vmatmul.f32.gmra.mxu0 %v84
    %v124 = vpop.f32.mrf.mxu0
    %v125 = vadd.f32 %v77, %v124
    %126 = vmatmul.f32.gmra.mxu0 %v87
    %v127 = vpop.f32.mrf.mxu0
    %v128 = vadd.f32 %v77, %v127
    %129 = vmatmul.f32.gmra.mxu0 %v90
    %v130 = vpop.f32.mrf.mxu0
    %v131 = vadd.f32 %v77, %v130
    %132 = vmatmul.f32.gmra.mxu0 %v93
    %v133 = vpop.f32.mrf.mxu0
    %v134 = vadd.f32 %v77, %v133
    %135 = vmatmul.f32.gmra.mxu0 %v96
    %v136 = vpop.f32.mrf.mxu0
    %v137 = vadd.f32 %v77, %v136
    %138 = vmatmul.f32.gmra.mxu0 %v99
    %v139 = vpop.f32.mrf.mxu0
    %v140 = vadd.f32 %v77, %v139
    %141 = vmatmul.f32.gmra.mxu0 %v102
    %v142 = vpop.f32.mrf.mxu0
    %v143 = vadd.f32 %v77, %v142
    %144 = vdwg.mxu0
    %145 = vst [vmem:[#allocation2] sm:$0xff] %v122
    %146 = vst [vmem:[#allocation2 + $0x8] sm:$0xff] %v125
    %147 = vst [vmem:[#allocation2 + $0x10] sm:$0xff] %v128
    %148 = vst [vmem:[#allocation2 + $0x18] sm:$0xff] %v131
    %149 = vst [vmem:[#allocation2 + $0x20] sm:$0xff] %v134
    %150 = vst [vmem:[#allocation2 + $0x28] sm:$0xff] %v137
    %151 = vst [vmem:[#allocation2 + $0x30] sm:$0xff] %v140
    %152 = vst [vmem:[#allocation2 + $0x38] sm:$0xff] %v143
    %v153 = vld [vmem:[#allocation6] sm:$0xff]
    %v154 = vld [vmem:[#allocation6 + $0x8] sm:$0xff]
    %v155 = vld [vmem:[#allocation6 + $0x10] sm:$0xff]
    %v156 = vld [vmem:[#allocation6 + $0x18] sm:$0xff]
    %v157 = vlaneseq
    %v158 = vand.u32 %v157, 127
    %vm159 = vcmp.ge.s32.totalorder %v158, 64
    %vm160 = vcmp.lt.s32.totalorder %v158, 96
    %vm161 = vmand %vm159, %vm160
    %v162 = vld [vmem:[%s2] sm:$0xff]
    %v163 = vld [vmem:[%s3] sm:$0xff]
    %v164 = vld [vmem:[#allocation2] sm:$0xff]
    %v166 = vsel %vm79, %v162, 0
    %168 = vmatpush.msra.mxu0 0.0
    %169 = vmatpush.msra.mxu0 0.0
    %170 = vmatpush.msra.mxu0 0.0
    %171 = vmatpush.msra.mxu0 0.0
    %172 = vmatpush.msra.mxu0 0.0
    %173 = vmatpush.msra.mxu0 0.0
    %174 = vmatpush.msra.mxu0 0.0
    %175 = vmatpush.msra.mxu0 0.0
    %176 = vmatpush.msra.mxu0 0.0
    %177 = vmatpush.msra.mxu0 0.0
    %178 = vmatpush.msra.mxu0 0.0
    %179 = vmatpush.msra.mxu0 0.0
    %180 = vmatpush.msra.mxu0 %v156
    %181 = vmatpush.msra.mxu0 %v155
    %182 = vmatpush.msra.mxu0 %v154
    %183 = vmatpush.msra.mxu0 %v153
    %184 = vmatmul.f32.gmra.mxu0 %v166
    %v185 = vpop.f32.mrf.mxu0
    %v186 = vadd.f32 0.0, %v185
    %187 = vdwg.mxu0
    %v188 = vadd.f32 %v164, %v186
    %v189 = vxor.u32 %v188, 2147483648
    %v190 = vmul.f32 %v189, 1.442695
    %v191 = vpow.pop %v190
    %v192 = vadd.f32 %v191, 1.0
    %v193 = vrcp.pop %v192
    %v194 = vmul.f32 %v192, %v193
    %v195 = vsub.f32 1.0, %v194
    %v196 = vmul.f32 %v193, %v195
    %v197 = vadd.f32 %v193, %v196
    %vm198 = vweird.f32 %v192
    %vm199 = vweird.f32 %v193
    %vm200 = vmor %vm198, %vm199
    %v201 = vsel %vm200, %v193, %v197
    %v202 = vand.u32 2147483647, %v192
    %vm203 = vcmp.eq.f32.partialorder %v202, 8.507059e+37
    %v204 = vand.u32 %v192, 2147483648
    %v205 = vor.u32 1.1754944e-38, %v204
    %v206 = vsel %vm203, %v205, %v201
    %v207 = vmul.f32 1.0, %v206
    %v208 = vmul.f32 %v207, 2.0
    %v209 = vsub.f32 %v208, 1.0
    %v210 = vsel %vm161, %v209, %v207
    %212 = vrot.lane.b32.xlu0 %v163, 32
    %v213 = vpop.permute.xlu0 %212
    %v215 = vmul.f32 %v210, %v213
    %217 = vrot.lane.b32.xlu0 %v210, 64
    %v218 = vpop.permute.xlu0 %217
    %v220 = vmul.f32 %v210, %v218
    %222 = vrot.lane.b32.xlu0 %v220, 32
    %v223 = vpop.permute.xlu0 %222
    %v225 = vadd.f32 %v215, %v223
    %v226 = vtanh.pop %v225
    %228 = vrot.lane.b32.xlu0 %v226, 64
    %v229 = vpop.permute.xlu0 %228
    %v231 = vmul.f32 %v210, %v229
    %v232 = vld [vmem:[%s1] sm:$0xff]
    %vm233 = vcmp.gt.f32.partialorder %v232, 0.5
    %v234 = vsel %vm233, 1, 0
    %235 = vset.pattern.permute.xlu0 0
    %236 = vperm.xlu0 %235, %v234
    %v237 = vpop.permute.xlu0 %236
    %vm238 = vcmp.eq.s32.totalorder %v237, 1
    %240 = vrot.lane.b32.xlu0 %v231, 32
    %v241 = vpop.permute.xlu0 %240
    %v243 = vsel %vm238, %v162, %v241
    %245 = vrot.lane.b32.xlu0 %v225, 96
    %v246 = vpop.permute.xlu0 %245
    %v248 = vsel %vm238, %v163, %v246
    %249 = vst.msk [vmem:[#allocation8] sm:$0xff] %vm79, %v243
    %s250 = scalar_lea.vmem [#allocation2], 8
    %v251 = vld [vmem:[%s250] sm:$0xff]
    %v253 = vsel %vm79, %v243, 0
    %255 = vmatpush.msra.mxu0 0.0
    %256 = vmatpush.msra.mxu0 0.0
    %257 = vmatpush.msra.mxu0 0.0
    %258 = vmatpush.msra.mxu0 0.0
    %259 = vmatpush.msra.mxu0 0.0
    %260 = vmatpush.msra.mxu0 0.0
    %261 = vmatpush.msra.mxu0 0.0
    %262 = vmatpush.msra.mxu0 0.0
    %263 = vmatpush.msra.mxu0 0.0
    %264 = vmatpush.msra.mxu0 0.0
    %265 = vmatpush.msra.mxu0 0.0
    %266 = vmatpush.msra.mxu0 0.0
    %267 = vmatpush.msra.mxu0 %v156
    %268 = vmatpush.msra.mxu0 %v155
    %269 = vmatpush.msra.mxu0 %v154
    %270 = vmatpush.msra.mxu0 %v153
    %271 = vmatmul.f32.gmra.mxu0 %v253
    %v272 = vpop.f32.mrf.mxu0
    %v273 = vadd.f32 0.0, %v272
    %274 = vdwg.mxu0
    %v275 = vadd.f32 %v251, %v273
    %v276 = vxor.u32 %v275, 2147483648
    %v277 = vmul.f32 %v276, 1.442695
    %v278 = vpow.pop %v277
    %v279 = vadd.f32 %v278, 1.0
    %v280 = vrcp.pop %v279
    %v281 = vmul.f32 %v279, %v280
    %v282 = vsub.f32 1.0, %v281
    %v283 = vmul.f32 %v280, %v282
    %v284 = vadd.f32 %v280, %v283
    %vm285 = vweird.f32 %v279
    %vm286 = vweird.f32 %v280
    %vm287 = vmor %vm285, %vm286
    %v288 = vsel %vm287, %v280, %v284
    %v289 = vand.u32 2147483647, %v279
    %vm290 = vcmp.eq.f32.partialorder %v289, 8.507059e+37
    %v291 = vand.u32 %v279, 2147483648
    %v292 = vor.u32 1.1754944e-38, %v291
    %v293 = vsel %vm290, %v292, %v288
    %v294 = vmul.f32 1.0, %v293
    %v295 = vmul.f32 %v294, 2.0
    %v296 = vsub.f32 %v295, 1.0
    %v297 = vsel %vm161, %v296, %v294
    %299 = vrot.lane.b32.xlu0 %v248, 32
    %v300 = vpop.permute.xlu0 %299
    %v302 = vmul.f32 %v297, %v300
    %304 = vrot.lane.b32.xlu0 %v297, 64
    %v305 = vpop.permute.xlu0 %304
    %v307 = vmul.f32 %v297, %v305
    %309 = vrot.lane.b32.xlu0 %v307, 32
    %v310 = vpop.permute.xlu0 %309
    %v312 = vadd.f32 %v302, %v310
    %v313 = vtanh.pop %v312
    %315 = vrot.lane.b32.xlu0 %v313, 64
    %v316 = vpop.permute.xlu0 %315
    %v318 = vmul.f32 %v297, %v316
    %s319 = scalar_lea.vmem %s1, 8
    %v320 = vld [vmem:[%s319] sm:$0xff]
    %vm321 = vcmp.gt.f32.partialorder %v320, 0.5
    %v322 = vsel %vm321, 1, 0
    %323 = vset.pattern.permute.xlu0 0
    %324 = vperm.xlu0 %323, %v322
    %v325 = vpop.permute.xlu0 %324
    %vm326 = vcmp.eq.s32.totalorder %v325, 1
    %328 = vrot.lane.b32.xlu0 %v318, 32
    %v329 = vpop.permute.xlu0 %328
    %v331 = vsel %vm326, %v243, %v329
    %333 = vrot.lane.b32.xlu0 %v312, 96
    %v334 = vpop.permute.xlu0 %333
    %v336 = vsel %vm326, %v248, %v334
    %s337 = scalar_lea.vmem [#allocation8], 8
    %338 = vst.msk [vmem:[%s337] sm:$0xff] %vm79, %v331
    %s339 = scalar_lea.vmem [#allocation2], 16
    %v340 = vld [vmem:[%s339] sm:$0xff]
    %v342 = vsel %vm79, %v331, 0
    %344 = vmatpush.msra.mxu0 0.0
    %345 = vmatpush.msra.mxu0 0.0
    %346 = vmatpush.msra.mxu0 0.0
    %347 = vmatpush.msra.mxu0 0.0
    %348 = vmatpush.msra.mxu0 0.0
    %349 = vmatpush.msra.mxu0 0.0
    %350 = vmatpush.msra.mxu0 0.0
    %351 = vmatpush.msra.mxu0 0.0
    %352 = vmatpush.msra.mxu0 0.0
    %353 = vmatpush.msra.mxu0 0.0
    %354 = vmatpush.msra.mxu0 0.0
    %355 = vmatpush.msra.mxu0 0.0
    %356 = vmatpush.msra.mxu0 %v156
    %357 = vmatpush.msra.mxu0 %v155
    %358 = vmatpush.msra.mxu0 %v154
    %359 = vmatpush.msra.mxu0 %v153
    %360 = vmatmul.f32.gmra.mxu0 %v342
    %v361 = vpop.f32.mrf.mxu0
    %v362 = vadd.f32 0.0, %v361
    %363 = vdwg.mxu0
    %v364 = vadd.f32 %v340, %v362
    %v365 = vxor.u32 %v364, 2147483648
    %v366 = vmul.f32 %v365, 1.442695
    %v367 = vpow.pop %v366
    %v368 = vadd.f32 %v367, 1.0
    %v369 = vrcp.pop %v368
    %v370 = vmul.f32 %v368, %v369
    %v371 = vsub.f32 1.0, %v370
    %v372 = vmul.f32 %v369, %v371
    %v373 = vadd.f32 %v369, %v372
    %vm374 = vweird.f32 %v368
    %vm375 = vweird.f32 %v369
    %vm376 = vmor %vm374, %vm375
    %v377 = vsel %vm376, %v369, %v373
    %v378 = vand.u32 2147483647, %v368
    %vm379 = vcmp.eq.f32.partialorder %v378, 8.507059e+37
    %v380 = vand.u32 %v368, 2147483648
    %v381 = vor.u32 1.1754944e-38, %v380
    %v382 = vsel %vm379, %v381, %v377
    %v383 = vmul.f32 1.0, %v382
    %v384 = vmul.f32 %v383, 2.0
    %v385 = vsub.f32 %v384, 1.0
    %v386 = vsel %vm161, %v385, %v383
    %388 = vrot.lane.b32.xlu0 %v336, 32
    %v389 = vpop.permute.xlu0 %388
    %v391 = vmul.f32 %v386, %v389
    %393 = vrot.lane.b32.xlu0 %v386, 64
    %v394 = vpop.permute.xlu0 %393
    %v396 = vmul.f32 %v386, %v394
    %398 = vrot.lane.b32.xlu0 %v396, 32
    %v399 = vpop.permute.xlu0 %398
    %v401 = vadd.f32 %v391, %v399
    %v402 = vtanh.pop %v401
    %404 = vrot.lane.b32.xlu0 %v402, 64
    %v405 = vpop.permute.xlu0 %404
    %v407 = vmul.f32 %v386, %v405
    %s408 = scalar_lea.vmem %s1, 16
    %v409 = vld [vmem:[%s408] sm:$0xff]
    %vm410 = vcmp.gt.f32.partialorder %v409, 0.5
    %v411 = vsel %vm410, 1, 0
    %412 = vset.pattern.permute.xlu0 0
    %413 = vperm.xlu0 %412, %v411
    %v414 = vpop.permute.xlu0 %413
    %vm415 = vcmp.eq.s32.totalorder %v414, 1
    %417 = vrot.lane.b32.xlu0 %v407, 32
    %v418 = vpop.permute.xlu0 %417
    %v420 = vsel %vm415, %v331, %v418
    %422 = vrot.lane.b32.xlu0 %v401, 96
    %v423 = vpop.permute.xlu0 %422
    %v425 = vsel %vm415, %v336, %v423
    %s426 = scalar_lea.vmem [#allocation8], 16
    %427 = vst.msk [vmem:[%s426] sm:$0xff] %vm79, %v420
    %s428 = scalar_lea.vmem [#allocation2], 24
    %v429 = vld [vmem:[%s428] sm:$0xff]
    %v431 = vsel %vm79, %v420, 0
    %433 = vmatpush.msra.mxu0 0.0
    %434 = vmatpush.msra.mxu0 0.0
    %435 = vmatpush.msra.mxu0 0.0
    %436 = vmatpush.msra.mxu0 0.0
    %437 = vmatpush.msra.mxu0 0.0
    %438 = vmatpush.msra.mxu0 0.0
    %439 = vmatpush.msra.mxu0 0.0
    %440 = vmatpush.msra.mxu0 0.0
    %441 = vmatpush.msra.mxu0 0.0
    %442 = vmatpush.msra.mxu0 0.0
    %443 = vmatpush.msra.mxu0 0.0
    %444 = vmatpush.msra.mxu0 0.0
    %445 = vmatpush.msra.mxu0 %v156
    %446 = vmatpush.msra.mxu0 %v155
    %447 = vmatpush.msra.mxu0 %v154
    %448 = vmatpush.msra.mxu0 %v153
    %449 = vmatmul.f32.gmra.mxu0 %v431
    %v450 = vpop.f32.mrf.mxu0
    %v451 = vadd.f32 0.0, %v450
    %452 = vdwg.mxu0
    %v453 = vadd.f32 %v429, %v451
    %v454 = vxor.u32 %v453, 2147483648
    %v455 = vmul.f32 %v454, 1.442695
    %v456 = vpow.pop %v455
    %v457 = vadd.f32 %v456, 1.0
    %v458 = vrcp.pop %v457
    %v459 = vmul.f32 %v457, %v458
    %v460 = vsub.f32 1.0, %v459
    %v461 = vmul.f32 %v458, %v460
    %v462 = vadd.f32 %v458, %v461
    %vm463 = vweird.f32 %v457
    %vm464 = vweird.f32 %v458
    %vm465 = vmor %vm463, %vm464
    %v466 = vsel %vm465, %v458, %v462
    %v467 = vand.u32 2147483647, %v457
    %vm468 = vcmp.eq.f32.partialorder %v467, 8.507059e+37
    %v469 = vand.u32 %v457, 2147483648
    %v470 = vor.u32 1.1754944e-38, %v469
    %v471 = vsel %vm468, %v470, %v466
    %v472 = vmul.f32 1.0, %v471
    %v473 = vmul.f32 %v472, 2.0
    %v474 = vsub.f32 %v473, 1.0
    %v475 = vsel %vm161, %v474, %v472
    %477 = vrot.lane.b32.xlu0 %v425, 32
    %v478 = vpop.permute.xlu0 %477
    %v480 = vmul.f32 %v475, %v478
    %482 = vrot.lane.b32.xlu0 %v475, 64
    %v483 = vpop.permute.xlu0 %482
    %v485 = vmul.f32 %v475, %v483
    %487 = vrot.lane.b32.xlu0 %v485, 32
    %v488 = vpop.permute.xlu0 %487
    %v490 = vadd.f32 %v480, %v488
    %v491 = vtanh.pop %v490
    %493 = vrot.lane.b32.xlu0 %v491, 64
    %v494 = vpop.permute.xlu0 %493
    %v496 = vmul.f32 %v475, %v494
    %s497 = scalar_lea.vmem %s1, 24
    %v498 = vld [vmem:[%s497] sm:$0xff]
    %vm499 = vcmp.gt.f32.partialorder %v498, 0.5
    %v500 = vsel %vm499, 1, 0
    %501 = vset.pattern.permute.xlu0 0
    %502 = vperm.xlu0 %501, %v500
    %v503 = vpop.permute.xlu0 %502
    %vm504 = vcmp.eq.s32.totalorder %v503, 1
    %506 = vrot.lane.b32.xlu0 %v496, 32
    %v507 = vpop.permute.xlu0 %506
    %v509 = vsel %vm504, %v420, %v507
    %511 = vrot.lane.b32.xlu0 %v490, 96
    %v512 = vpop.permute.xlu0 %511
    %v514 = vsel %vm504, %v425, %v512
    %s515 = scalar_lea.vmem [#allocation8], 24
    %516 = vst.msk [vmem:[%s515] sm:$0xff] %vm79, %v509
    %s517 = scalar_lea.vmem [#allocation2], 32
    %v518 = vld [vmem:[%s517] sm:$0xff]
    %v520 = vsel %vm79, %v509, 0
    %522 = vmatpush.msra.mxu0 0.0
    %523 = vmatpush.msra.mxu0 0.0
    %524 = vmatpush.msra.mxu0 0.0
    %525 = vmatpush.msra.mxu0 0.0
    %526 = vmatpush.msra.mxu0 0.0
    %527 = vmatpush.msra.mxu0 0.0
    %528 = vmatpush.msra.mxu0 0.0
    %529 = vmatpush.msra.mxu0 0.0
    %530 = vmatpush.msra.mxu0 0.0
    %531 = vmatpush.msra.mxu0 0.0
    %532 = vmatpush.msra.mxu0 0.0
    %533 = vmatpush.msra.mxu0 0.0
    %534 = vmatpush.msra.mxu0 %v156
    %535 = vmatpush.msra.mxu0 %v155
    %536 = vmatpush.msra.mxu0 %v154
    %537 = vmatpush.msra.mxu0 %v153
    %538 = vmatmul.f32.gmra.mxu0 %v520
    %v539 = vpop.f32.mrf.mxu0
    %v540 = vadd.f32 0.0, %v539
    %541 = vdwg.mxu0
    %v542 = vadd.f32 %v518, %v540
    %v543 = vxor.u32 %v542, 2147483648
    %v544 = vmul.f32 %v543, 1.442695
    %v545 = vpow.pop %v544
    %v546 = vadd.f32 %v545, 1.0
    %v547 = vrcp.pop %v546
    %v548 = vmul.f32 %v546, %v547
    %v549 = vsub.f32 1.0, %v548
    %v550 = vmul.f32 %v547, %v549
    %v551 = vadd.f32 %v547, %v550
    %vm552 = vweird.f32 %v546
    %vm553 = vweird.f32 %v547
    %vm554 = vmor %vm552, %vm553
    %v555 = vsel %vm554, %v547, %v551
    %v556 = vand.u32 2147483647, %v546
    %vm557 = vcmp.eq.f32.partialorder %v556, 8.507059e+37
    %v558 = vand.u32 %v546, 2147483648
    %v559 = vor.u32 1.1754944e-38, %v558
    %v560 = vsel %vm557, %v559, %v555
    %v561 = vmul.f32 1.0, %v560
    %v562 = vmul.f32 %v561, 2.0
    %v563 = vsub.f32 %v562, 1.0
    %v564 = vsel %vm161, %v563, %v561
    %566 = vrot.lane.b32.xlu0 %v514, 32
    %v567 = vpop.permute.xlu0 %566
    %v569 = vmul.f32 %v564, %v567
    %571 = vrot.lane.b32.xlu0 %v564, 64
    %v572 = vpop.permute.xlu0 %571
    %v574 = vmul.f32 %v564, %v572
    %576 = vrot.lane.b32.xlu0 %v574, 32
    %v577 = vpop.permute.xlu0 %576
    %v579 = vadd.f32 %v569, %v577
    %v580 = vtanh.pop %v579
    %582 = vrot.lane.b32.xlu0 %v580, 64
    %v583 = vpop.permute.xlu0 %582
    %v585 = vmul.f32 %v564, %v583
    %s586 = scalar_lea.vmem %s1, 32
    %v587 = vld [vmem:[%s586] sm:$0xff]
    %vm588 = vcmp.gt.f32.partialorder %v587, 0.5
    %v589 = vsel %vm588, 1, 0
    %590 = vset.pattern.permute.xlu0 0
    %591 = vperm.xlu0 %590, %v589
    %v592 = vpop.permute.xlu0 %591
    %vm593 = vcmp.eq.s32.totalorder %v592, 1
    %595 = vrot.lane.b32.xlu0 %v585, 32
    %v596 = vpop.permute.xlu0 %595
    %v598 = vsel %vm593, %v509, %v596
    %600 = vrot.lane.b32.xlu0 %v579, 96
    %v601 = vpop.permute.xlu0 %600
    %v603 = vsel %vm593, %v514, %v601
    %s604 = scalar_lea.vmem [#allocation8], 32
    %605 = vst.msk [vmem:[%s604] sm:$0xff] %vm79, %v598
    %s606 = scalar_lea.vmem [#allocation2], 40
    %v607 = vld [vmem:[%s606] sm:$0xff]
    %v609 = vsel %vm79, %v598, 0
    %611 = vmatpush.msra.mxu0 0.0
    %612 = vmatpush.msra.mxu0 0.0
    %613 = vmatpush.msra.mxu0 0.0
    %614 = vmatpush.msra.mxu0 0.0
    %615 = vmatpush.msra.mxu0 0.0
    %616 = vmatpush.msra.mxu0 0.0
    %617 = vmatpush.msra.mxu0 0.0
    %618 = vmatpush.msra.mxu0 0.0
    %619 = vmatpush.msra.mxu0 0.0
    %620 = vmatpush.msra.mxu0 0.0
    %621 = vmatpush.msra.mxu0 0.0
    %622 = vmatpush.msra.mxu0 0.0
    %623 = vmatpush.msra.mxu0 %v156
    %624 = vmatpush.msra.mxu0 %v155
    %625 = vmatpush.msra.mxu0 %v154
    %626 = vmatpush.msra.mxu0 %v153
    %627 = vmatmul.f32.gmra.mxu0 %v609
    %v628 = vpop.f32.mrf.mxu0
    %v629 = vadd.f32 0.0, %v628
    %630 = vdwg.mxu0
    %v631 = vadd.f32 %v607, %v629
    %v632 = vxor.u32 %v631, 2147483648
    %v633 = vmul.f32 %v632, 1.442695
    %v634 = vpow.pop %v633
    %v635 = vadd.f32 %v634, 1.0
    %v636 = vrcp.pop %v635
    %v637 = vmul.f32 %v635, %v636
    %v638 = vsub.f32 1.0, %v637
    %v639 = vmul.f32 %v636, %v638
    %v640 = vadd.f32 %v636, %v639
    %vm641 = vweird.f32 %v635
    %vm642 = vweird.f32 %v636
    %vm643 = vmor %vm641, %vm642
    %v644 = vsel %vm643, %v636, %v640
    %v645 = vand.u32 2147483647, %v635
    %vm646 = vcmp.eq.f32.partialorder %v645, 8.507059e+37
    %v647 = vand.u32 %v635, 2147483648
    %v648 = vor.u32 1.1754944e-38, %v647
    %v649 = vsel %vm646, %v648, %v644
    %v650 = vmul.f32 1.0, %v649
    %v651 = vmul.f32 %v650, 2.0
    %v652 = vsub.f32 %v651, 1.0
    %v653 = vsel %vm161, %v652, %v650
    %655 = vrot.lane.b32.xlu0 %v603, 32
    %v656 = vpop.permute.xlu0 %655
    %v658 = vmul.f32 %v653, %v656
    %660 = vrot.lane.b32.xlu0 %v653, 64
    %v661 = vpop.permute.xlu0 %660
    %v663 = vmul.f32 %v653, %v661
    %665 = vrot.lane.b32.xlu0 %v663, 32
    %v666 = vpop.permute.xlu0 %665
    %v668 = vadd.f32 %v658, %v666
    %v669 = vtanh.pop %v668
    %671 = vrot.lane.b32.xlu0 %v669, 64
    %v672 = vpop.permute.xlu0 %671
    %v674 = vmul.f32 %v653, %v672
    %s675 = scalar_lea.vmem %s1, 40
    %v676 = vld [vmem:[%s675] sm:$0xff]
    %vm677 = vcmp.gt.f32.partialorder %v676, 0.5
    %v678 = vsel %vm677, 1, 0
    %679 = vset.pattern.permute.xlu0 0
    %680 = vperm.xlu0 %679, %v678
    %v681 = vpop.permute.xlu0 %680
    %vm682 = vcmp.eq.s32.totalorder %v681, 1
    %684 = vrot.lane.b32.xlu0 %v674, 32
    %v685 = vpop.permute.xlu0 %684
    %v687 = vsel %vm682, %v598, %v685
    %689 = vrot.lane.b32.xlu0 %v668, 96
    %v690 = vpop.permute.xlu0 %689
    %v692 = vsel %vm682, %v603, %v690
    %s693 = scalar_lea.vmem [#allocation8], 40
    %694 = vst.msk [vmem:[%s693] sm:$0xff] %vm79, %v687
    %s695 = scalar_lea.vmem [#allocation2], 48
    %v696 = vld [vmem:[%s695] sm:$0xff]
    %v698 = vsel %vm79, %v687, 0
    %700 = vmatpush.msra.mxu0 0.0
    %701 = vmatpush.msra.mxu0 0.0
    %702 = vmatpush.msra.mxu0 0.0
    %703 = vmatpush.msra.mxu0 0.0
    %704 = vmatpush.msra.mxu0 0.0
    %705 = vmatpush.msra.mxu0 0.0
    %706 = vmatpush.msra.mxu0 0.0
    %707 = vmatpush.msra.mxu0 0.0
    %708 = vmatpush.msra.mxu0 0.0
    %709 = vmatpush.msra.mxu0 0.0
    %710 = vmatpush.msra.mxu0 0.0
    %711 = vmatpush.msra.mxu0 0.0
    %712 = vmatpush.msra.mxu0 %v156
    %713 = vmatpush.msra.mxu0 %v155
    %714 = vmatpush.msra.mxu0 %v154
    %715 = vmatpush.msra.mxu0 %v153
    %716 = vmatmul.f32.gmra.mxu0 %v698
    %v717 = vpop.f32.mrf.mxu0
    %v718 = vadd.f32 0.0, %v717
    %719 = vdwg.mxu0
    %v720 = vadd.f32 %v696, %v718
    %v721 = vxor.u32 %v720, 2147483648
    %v722 = vmul.f32 %v721, 1.442695
    %v723 = vpow.pop %v722
    %v724 = vadd.f32 %v723, 1.0
    %v725 = vrcp.pop %v724
    %v726 = vmul.f32 %v724, %v725
    %v727 = vsub.f32 1.0, %v726
    %v728 = vmul.f32 %v725, %v727
    %v729 = vadd.f32 %v725, %v728
    %vm730 = vweird.f32 %v724
    %vm731 = vweird.f32 %v725
    %vm732 = vmor %vm730, %vm731
    %v733 = vsel %vm732, %v725, %v729
    %v734 = vand.u32 2147483647, %v724
    %vm735 = vcmp.eq.f32.partialorder %v734, 8.507059e+37
    %v736 = vand.u32 %v724, 2147483648
    %v737 = vor.u32 1.1754944e-38, %v736
    %v738 = vsel %vm735, %v737, %v733
    %v739 = vmul.f32 1.0, %v738
    %v740 = vmul.f32 %v739, 2.0
    %v741 = vsub.f32 %v740, 1.0
    %v742 = vsel %vm161, %v741, %v739
    %744 = vrot.lane.b32.xlu0 %v692, 32
    %v745 = vpop.permute.xlu0 %744
    %v747 = vmul.f32 %v742, %v745
    %749 = vrot.lane.b32.xlu0 %v742, 64
    %v750 = vpop.permute.xlu0 %749
    %v752 = vmul.f32 %v742, %v750
    %754 = vrot.lane.b32.xlu0 %v752, 32
    %v755 = vpop.permute.xlu0 %754
    %v757 = vadd.f32 %v747, %v755
    %v758 = vtanh.pop %v757
    %760 = vrot.lane.b32.xlu0 %v758, 64
    %v761 = vpop.permute.xlu0 %760
    %v763 = vmul.f32 %v742, %v761
    %s764 = scalar_lea.vmem %s1, 48
    %v765 = vld [vmem:[%s764] sm:$0xff]
    %vm766 = vcmp.gt.f32.partialorder %v765, 0.5
    %v767 = vsel %vm766, 1, 0
    %768 = vset.pattern.permute.xlu0 0
    %769 = vperm.xlu0 %768, %v767
    %v770 = vpop.permute.xlu0 %769
    %vm771 = vcmp.eq.s32.totalorder %v770, 1
    %773 = vrot.lane.b32.xlu0 %v763, 32
    %v774 = vpop.permute.xlu0 %773
    %v776 = vsel %vm771, %v687, %v774
    %778 = vrot.lane.b32.xlu0 %v757, 96
    %v779 = vpop.permute.xlu0 %778
    %v781 = vsel %vm771, %v692, %v779
    %s782 = scalar_lea.vmem [#allocation8], 48
    %783 = vst.msk [vmem:[%s782] sm:$0xff] %vm79, %v776
    %s784 = scalar_lea.vmem [#allocation2], 56
    %v785 = vld [vmem:[%s784] sm:$0xff]
    %v787 = vsel %vm79, %v776, 0
    %789 = vmatpush.msra.mxu0 0.0
    %790 = vmatpush.msra.mxu0 0.0
    %791 = vmatpush.msra.mxu0 0.0
    %792 = vmatpush.msra.mxu0 0.0
    %793 = vmatpush.msra.mxu0 0.0
    %794 = vmatpush.msra.mxu0 0.0
    %795 = vmatpush.msra.mxu0 0.0
    %796 = vmatpush.msra.mxu0 0.0
    %797 = vmatpush.msra.mxu0 0.0
    %798 = vmatpush.msra.mxu0 0.0
    %799 = vmatpush.msra.mxu0 0.0
    %800 = vmatpush.msra.mxu0 0.0
    %801 = vmatpush.msra.mxu0 %v156
    %802 = vmatpush.msra.mxu0 %v155
    %803 = vmatpush.msra.mxu0 %v154
    %804 = vmatpush.msra.mxu0 %v153
    %805 = vmatmul.f32.gmra.mxu0 %v787
    %v806 = vpop.f32.mrf.mxu0
    %v807 = vadd.f32 0.0, %v806
    %808 = vdwg.mxu0
    %v809 = vadd.f32 %v785, %v807
    %v810 = vxor.u32 %v809, 2147483648
    %v811 = vmul.f32 %v810, 1.442695
    %v812 = vpow.pop %v811
    %v813 = vadd.f32 %v812, 1.0
    %v814 = vrcp.pop %v813
    %v815 = vmul.f32 %v813, %v814
    %v816 = vsub.f32 1.0, %v815
    %v817 = vmul.f32 %v814, %v816
    %v818 = vadd.f32 %v814, %v817
    %vm819 = vweird.f32 %v813
    %vm820 = vweird.f32 %v814
    %vm821 = vmor %vm819, %vm820
    %v822 = vsel %vm821, %v814, %v818
    %v823 = vand.u32 2147483647, %v813
    %vm824 = vcmp.eq.f32.partialorder %v823, 8.507059e+37
    %v825 = vand.u32 %v813, 2147483648
    %v826 = vor.u32 1.1754944e-38, %v825
    %v827 = vsel %vm824, %v826, %v822
    %v828 = vmul.f32 1.0, %v827
    %v829 = vmul.f32 %v828, 2.0
    %v830 = vsub.f32 %v829, 1.0
    %v831 = vsel %vm161, %v830, %v828
    %833 = vrot.lane.b32.xlu0 %v781, 32
    %v834 = vpop.permute.xlu0 %833
    %v836 = vmul.f32 %v831, %v834
    %838 = vrot.lane.b32.xlu0 %v831, 64
    %v839 = vpop.permute.xlu0 %838
    %v841 = vmul.f32 %v831, %v839
    %843 = vrot.lane.b32.xlu0 %v841, 32
    %v844 = vpop.permute.xlu0 %843
    %v846 = vadd.f32 %v836, %v844
    %v847 = vtanh.pop %v846
    %849 = vrot.lane.b32.xlu0 %v847, 64
    %v850 = vpop.permute.xlu0 %849
    %v852 = vmul.f32 %v831, %v850
    %s853 = scalar_lea.vmem %s1, 56
    %v854 = vld [vmem:[%s853] sm:$0xff]
    %vm855 = vcmp.gt.f32.partialorder %v854, 0.5
    %v856 = vsel %vm855, 1, 0
    %857 = vset.pattern.permute.xlu0 0
    %858 = vperm.xlu0 %857, %v856
    %v859 = vpop.permute.xlu0 %858
    %vm860 = vcmp.eq.s32.totalorder %v859, 1
    %862 = vrot.lane.b32.xlu0 %v852, 32
    %v863 = vpop.permute.xlu0 %862
    %v865 = vsel %vm860, %v776, %v863
    %867 = vrot.lane.b32.xlu0 %v846, 96
    %v868 = vpop.permute.xlu0 %867
    %v870 = vsel %vm860, %v781, %v868
    %s871 = scalar_lea.vmem [#allocation8], 56
    %872 = vst.msk [vmem:[%s871] sm:$0xff] %vm79, %v865
    %873 = vst.msk [vmem:[#allocation9] sm:$0xff] %vm79, %v865
    %874 = vst.msk [vmem:[#allocation11] sm:$0xff] %vm79, %v870
    // Predicated region
    $region38: #{history_encoder_hl_rollout.1} parent=1 // pred_check
      _
    $region39: #{history_encoder_hl_rollout.1} parent=1 // pred_check_branch
      %876 = sbr.rel (0) target = $region41
    $region40: #{history_encoder_hl_rollout.1} parent=1 // pred_region
      %878 = vsyncadd [#allocation5], 0
      %s879 = sshll.u32 [#allocation8], 4
      %s880 = int_to_ptr.vmem [resolvable:$true] %s879
      %s881 = sshll.u32 %s7, 4
      %s882 = int_to_ptr.hbm [resolvable:$true] %s881
      %887 = dma.vmem_to_hbm [thread:$0]  %s880, 1024, %s882, [#allocation5], 128, 128, 8
    $region41: #{history_encoder_hl_rollout.1} parent=1 // pred_fallthru
      _
    // Predicated region
    $region42: #{history_encoder_hl_rollout.1} parent=1 // pred_check
      _
    $region43: #{history_encoder_hl_rollout.1} parent=1 // pred_check_branch
      %889 = sbr.rel (0) target = $region45
    $region44: #{history_encoder_hl_rollout.1} parent=1 // pred_region
      %891 = vsyncadd [#allocation10], 0
      %s893 = sshll.u32 [#allocation9], 4
      %s894 = int_to_ptr.vmem [resolvable:$true] %s893
      %s895 = sshll.u32 %s8, 4
      %s896 = int_to_ptr.hbm [resolvable:$true] %s895
      %898 = dma.vmem_to_hbm [thread:$0]  %s894, 128, %s896, [#allocation10]
    $region45: #{history_encoder_hl_rollout.1} parent=1 // pred_fallthru
      _
    // Predicated region
    $region46: #{history_encoder_hl_rollout.1} parent=1 // pred_check
      _
    $region47: #{history_encoder_hl_rollout.1} parent=1 // pred_check_branch
      %900 = sbr.rel (0) target = $region49
    $region48: #{history_encoder_hl_rollout.1} parent=1 // pred_region
      %902 = vsyncadd [#allocation10], 0
      %s904 = sshll.u32 [#allocation11], 4
      %s905 = int_to_ptr.vmem [resolvable:$true] %s904
      %s906 = sshll.u32 %s9, 4
      %s907 = int_to_ptr.hbm [resolvable:$true] %s906
      %909 = dma.vmem_to_hbm [thread:$0]  %s905, 128, %s907, [#allocation10]
    $region49: #{history_encoder_hl_rollout.1} parent=1 // pred_fallthru
      _
    // Predicated region
    $region50: #{history_encoder_hl_rollout.1} parent=1 // pred_check
      _
    $region51: #{history_encoder_hl_rollout.1} parent=1 // pred_check_branch
      %911 = sbr.rel (0) target = $region53
    $region52: #{history_encoder_hl_rollout.1} parent=1 // pred_region
      %913 = dma.done [#allocation5], 1024
    $region53: #{history_encoder_hl_rollout.1} parent=1 // pred_fallthru
      _
    // Predicated region
    $region54: #{history_encoder_hl_rollout.1} parent=1 // pred_check
      _
    $region55: #{history_encoder_hl_rollout.1} parent=1 // pred_check_branch
      %915 = sbr.rel (0) target = $region57
    $region56: #{history_encoder_hl_rollout.1} parent=1 // pred_region
      %917 = dma.done [#allocation10], 128
    $region57: #{history_encoder_hl_rollout.1} parent=1 // pred_fallthru
      _
    // Predicated region
    $region58: #{history_encoder_hl_rollout.1} parent=1 // pred_check
      _
    $region59: #{history_encoder_hl_rollout.1} parent=1 // pred_check_branch
      %919 = sbr.rel (0) target = $region61
    $region60: #{history_encoder_hl_rollout.1} parent=1 // pred_region
      %921 = dma.done [#allocation10], 128
    $region61: #{history_encoder_hl_rollout.1} parent=1 // pred_fallthru
      _
    %922 = vsyncpa [#allocation4], 1
    %923 = vsyncpa [#allocation7], 1
    %924 = vsyncpa [#allocation5], 1
    %925 = vsyncpa [#allocation10], 1

</llo_original>
